<compile_context>
chip_gen: v7x
topology: tpu7x:2x2x1
jax: 0.10.0
libtpu: 0.0.40
codegen_flags: <defaults>
</compile_context>

<pallas_src>
import functools

import jax
import jax.numpy as jnp
from jax.experimental import pallas as pl
from jax.experimental.pallas import tpu as pltpu


# --------------------------------------------------------------------------- #
# Kernel
# --------------------------------------------------------------------------- #
def cinsiyet_kernel(x_ref, w1_ref, b1_ref, w2_ref, b2_ref, o_ref):
    """One batch tile: softmax(relu(x @ W1 + b1) @ W2 + b2).

    x_ref  : (TM, In)      input tile, already in compute dtype (f32 / bf16)
    w1_ref : (In, H)       compute dtype, pre-transposed
    b1_ref : (1, H)        f32
    w2_ref : (H, C_out)    compute dtype, pre-transposed (padded only if C large)
    b2_ref : (1, C_out)    f32 (padded lanes, if any, hold -1e30)
    o_ref  : (TM, C_out)   output tile (f32 or bf16 store)
    """
    cdt = w1_ref.dtype

    # ---- layer1: Linear(input_size -> hidden_size), MXU, f32 accumulate ----
    h = jnp.dot(x_ref[...], w1_ref[...], preferred_element_type=jnp.float32)
    # ---- bias + ReLU in f32 (VPU; safe on v5e which lacks bf16 VPU) ----
    h = jnp.maximum(h + b1_ref[...], 0.0)

    # ---- layer2: Linear(hidden_size -> num_classes), MXU, f32 accumulate ----
    logits = jnp.dot(h.astype(cdt), w2_ref[...],
                     preferred_element_type=jnp.float32)
    logits = logits + b2_ref[...]

    # ---- softmax over the class (lane) axis, in f32 ----
    m = jnp.max(logits, axis=-1, keepdims=True)
    e = jnp.exp(logits - m)
    denom = jnp.sum(e, axis=-1, keepdims=True)
    # EUP vrcp (free slot) + one Newton step to recover ~f32-exact division.
    r = pl.reciprocal(denom, approx=True)
    r = r * (2.0 - denom * r)
    o_ref[...] = (e * r).astype(o_ref.dtype)


# --------------------------------------------------------------------------- #
# One-time parameter preparation (hoisted out of the per-call forward path)
# --------------------------------------------------------------------------- #
def prepare_params(w1, b1, w2, b2, compute_dtype=jnp.bfloat16):
    """Transpose PyTorch-layout weights, cast, pad class dim only if needed.

    w1 : (H, In)  PyTorch nn.Linear layout (out_features, in_features)
    b1 : (H,)
    w2 : (C, H)
    b2 : (C,)
    compute_dtype: bf16 recommended on ALL TPU generations (MXU is natively
                   bf16 on v5e/v6e/v7x; bias/ReLU/softmax stay f32 in-kernel).
    Returns (w1_t, b1_r, w2_t, b2_r) ready for the kernel.
    """
    H, In = w1.shape
    C = w2.shape[0]

    w1_t = jnp.asarray(w1).T.astype(compute_dtype)                  # (In, H)
    b1_r = jnp.asarray(b1, jnp.float32).reshape(1, H)               # (1, H)

    if C < 128 or C % 128 == 0:
        # Unpadded class dim: a full-extent last dim is a legal block shape.
        # For tiny C this avoids writing (and softmaxing) ~98% padding lanes.
        w2_t = jnp.asarray(w2).T.astype(compute_dtype)              # (H, C)
        b2_r = jnp.asarray(b2, jnp.float32).reshape(1, C)           # (1, C)
    else:
        # Large non-multiple-of-128 C: lane-dense padded store.  Padded classes
        # get a huge negative bias so exp() underflows to exactly 0 and the
        # softmax denominator only sees the real classes.
        C_pad = 128 * pl.cdiv(C, 128)
        w2_t = jnp.zeros((H, C_pad), compute_dtype).at[:, :C].set(
            jnp.asarray(w2).T.astype(compute_dtype))                # (H, C_pad)
        b2_r = jnp.full((1, C_pad), -1e30, jnp.float32).at[0, :C].set(
            jnp.asarray(b2, jnp.float32))                           # (1, C_pad)

    return w1_t, b1_r, w2_t, b2_r


# --------------------------------------------------------------------------- #
# Forward pass
# --------------------------------------------------------------------------- #
@functools.partial(jax.jit,
                   static_argnames=("num_classes", "block_rows", "out_dtype"))
def cinsiyet_net_forward(x, w1_t, b1_r, w2_t, b2_r, *, num_classes,
                         block_rows=2048, out_dtype=jnp.float32):
    """x: (B, In) -> (B, num_classes) softmax probabilities (out_dtype)."""
    B, In = x.shape
    H = w1_t.shape[1]
    C_out = w2_t.shape[1]
    cdt = w1_t.dtype

    # Cast x to the compute dtype ONCE here (halves x DMA bytes for bf16)
    # instead of per-tile on the VPU inside the kernel.
    x = x.astype(cdt)

    # Batch tile: at least 2 grid steps when B allows it (so "parallel" really
    # shards across v7x's 2 TensorCores), multiple of 8 sublanes, capped at
    # block_rows.  VMEM per step ~ TM*(In + C_out)*bytes*2 buffers — a few MiB
    # at most, far under the 32 MiB scoped limit on every generation.
    TM = min(block_rows, max(8, 8 * pl.cdiv(pl.cdiv(B, 2), 8)))
    B_pad = TM * pl.cdiv(B, TM)
    if B_pad != B:
        x = jnp.pad(x, ((0, B_pad - B), (0, 0)))

    const = lambda i: (0, 0)       # weights/biases: VMEM-resident, no re-fetch

    out = pl.pallas_call(
        cinsiyet_kernel,
        out_shape=jax.ShapeDtypeStruct((B_pad, C_out), out_dtype),
        grid=(B_pad // TM,),
        in_specs=[
            pl.BlockSpec((TM, In), lambda i: (i, 0)),    # x: tiled over batch
            pl.BlockSpec((In, H), const),                # W1
            pl.BlockSpec((1, H), const),                 # b1
            pl.BlockSpec((H, C_out), const),             # W2
            pl.BlockSpec((1, C_out), const),             # b2
        ],
        out_specs=pl.BlockSpec((TM, C_out), lambda i: (i, 0)),
        compiler_params=pltpu.CompilerParams(
            dimension_semantics=("parallel",),           # shard batch across TCs
            vmem_limit_bytes=32 * 1024 * 1024,
        ),
    )(x, w1_t, b1_r, w2_t, b2_r)

    return out[:B, :num_classes]


# --------------------------------------------------------------------------- #
# Pure-JAX reference (mirrors the PyTorch forward)
# --------------------------------------------------------------------------- #
def reference_forward(x, w1, b1, w2, b2):
    h = jnp.maximum(x @ w1.T + b1, 0.0)
    logits = h @ w2.T + b2
    return jax.nn.softmax(logits, axis=1)


if __name__ == "__main__":
    # Small shapes implied by the module: Linear(input, hidden) -> Linear(hidden, classes)
    batch, input_size, hidden_size, num_classes = 8, 16, 32, 2

    key = jax.random.PRNGKey(0)
    kx, kw1, kb1, kw2, kb2 = jax.random.split(key, 5)

    x = jax.random.normal(kx, (batch, input_size), dtype=jnp.float32)
    # PyTorch nn.Linear layout: (out_features, in_features)
    w1 = 0.1 * jax.random.normal(kw1, (hidden_size, input_size), dtype=jnp.float32)
    b1 = 0.1 * jax.random.normal(kb1, (hidden_size,), dtype=jnp.float32)
    w2 = 0.1 * jax.random.normal(kw2, (num_classes, hidden_size), dtype=jnp.float32)
    b2 = 0.1 * jax.random.normal(kb2, (num_classes,), dtype=jnp.float32)

    ref = reference_forward(x, w1, b1, w2, b2)

    # --- f32 compute, f32 store: must match the reference tightly ---
    params_f32 = prepare_params(w1, b1, w2, b2, compute_dtype=jnp.float32)
    out_f32 = cinsiyet_net_forward(x, *params_f32, num_classes=num_classes,
                                   out_dtype=jnp.float32)
    out_f32 = jax.block_until_ready(out_f32)
    assert out_f32.shape == (batch, num_classes)
    assert jnp.allclose(out_f32, ref, atol=5e-5, rtol=1e-4), "f32 mismatch vs reference"
    assert jnp.allclose(jnp.sum(out_f32, axis=1), 1.0, atol=1e-4)

    # --- bf16 operands + bf16 store (recommended perf path on v5e/v6e/v7x) ---
    params_bf16 = prepare_params(w1, b1, w2, b2, compute_dtype=jnp.bfloat16)
    out_bf16 = cinsiyet_net_forward(x, *params_bf16, num_classes=num_classes,
                                    out_dtype=jnp.bfloat16)
    out_bf16 = jax.block_until_ready(out_bf16)
    assert out_bf16.shape == (batch, num_classes)
    assert jnp.allclose(out_bf16.astype(jnp.float32), ref, atol=3e-2), \
        "bf16 mismatch vs reference"
    assert jnp.allclose(jnp.sum(out_bf16.astype(jnp.float32), axis=1), 1.0, atol=2e-2)

    print("KERNEL_OK")
</pallas_src>

<mosaic_0001>
module attributes {stable_mosaic.version = 11 : i64} {
  func.func @cinsiyet_kernel(%arg0: i32, %arg1: memref<8x16xf32, #tpu.memory_space<vmem>>, %arg2: memref<16x32xf32, #tpu.memory_space<vmem>>, %arg3: memref<1x32xf32, #tpu.memory_space<vmem>>, %arg4: memref<32x2xf32, #tpu.memory_space<vmem>>, %arg5: memref<1x2xf32, #tpu.memory_space<vmem>>, %arg6: memref<8x2xf32, #tpu.memory_space<vmem>>) attributes {dimension_semantics = [#tpu.dimension_semantics<parallel>], iteration_bounds = array<i64: 1>, scalar_prefetch = 0 : i64, scratch_operands = 0 : i64, tpu.core_type = #tpu.core_type<tc>, window_params = [{transform_indices = @transform_0, window_bounds = array<i64: 8, 16>}, {pipeline_mode = #tpu.pipeline_mode<synchronous>, transform_indices = @transform_1, window_bounds = array<i64: 16, 32>}, {pipeline_mode = #tpu.pipeline_mode<synchronous>, transform_indices = @transform_2, window_bounds = array<i64: 1, 32>}, {pipeline_mode = #tpu.pipeline_mode<synchronous>, transform_indices = @transform_3, window_bounds = array<i64: 32, 2>}, {pipeline_mode = #tpu.pipeline_mode<synchronous>, transform_indices = @transform_4, window_bounds = array<i64: 1, 2>}, {transform_indices = @transform_5, window_bounds = array<i64: 8, 2>}]} {
    %c0 = arith.constant 0 : index
    %c0_0 = arith.constant 0 : index
    %0 = vector.load %arg1[%c0, %c0_0] : memref<8x16xf32, #tpu.memory_space<vmem>>, vector<8x16xf32>
    %c0_1 = arith.constant 0 : index
    %c0_2 = arith.constant 0 : index
    %1 = vector.load %arg2[%c0_1, %c0_2] : memref<16x32xf32, #tpu.memory_space<vmem>>, vector<16x32xf32>
    %cst = arith.constant dense<0.000000e+00> : vector<8x32xf32>
    %2 = tpu.matmul %0, %1, %cst {dimension_numbers = #tpu.dot_dimension_numbers<[1], [0], [0], [1], [0, 0, 1, 1], [], []>} : vector<8x16xf32>, vector<16x32xf32>, vector<8x32xf32> -> vector<8x32xf32>
    %c0_3 = arith.constant 0 : index
    %c0_4 = arith.constant 0 : index
    %3 = vector.load %arg3[%c0_3, %c0_4] : memref<1x32xf32, #tpu.memory_space<vmem>>, vector<1x32xf32>
    %4 = vector.broadcast %3 : vector<1x32xf32> to vector<8x32xf32>
    %5 = arith.addf %2, %4 : vector<8x32xf32>
    %cst_5 = arith.constant 0.000000e+00 : f32
    %6 = vector.broadcast %cst_5 : f32 to vector<8x32xf32>
    %7 = arith.maximumf %5, %6 : vector<8x32xf32>
    %c0_6 = arith.constant 0 : index
    %c0_7 = arith.constant 0 : index
    %8 = vector.load %arg4[%c0_6, %c0_7] : memref<32x2xf32, #tpu.memory_space<vmem>>, vector<32x2xf32>
    %cst_8 = arith.constant dense<0.000000e+00> : vector<8x2xf32>
    %9 = tpu.matmul %7, %8, %cst_8 {dimension_numbers = #tpu.dot_dimension_numbers<[1], [0], [0], [1], [0, 0, 1, 1], [], []>} : vector<8x32xf32>, vector<32x2xf32>, vector<8x2xf32> -> vector<8x2xf32>
    %c0_9 = arith.constant 0 : index
    %c0_10 = arith.constant 0 : index
    %10 = vector.load %arg5[%c0_9, %c0_10] : memref<1x2xf32, #tpu.memory_space<vmem>>, vector<1x2xf32>
    %11 = vector.broadcast %10 : vector<1x2xf32> to vector<8x2xf32>
    %12 = arith.addf %9, %11 : vector<8x2xf32>
    %cst_11 = arith.constant dense<0xFF800000> : vector<8xf32>
    %13 = vector.multi_reduction <maximumf>, %12, %cst_11 [1] : vector<8x2xf32> to vector<8xf32>
    %14 = vector.shape_cast %13 : vector<8xf32> to vector<8x1xf32>
    %15 = vector.broadcast %14 : vector<8x1xf32> to vector<8x2xf32>
    %16 = arith.subf %12, %15 : vector<8x2xf32>
    %17 = math.exp %16 : vector<8x2xf32>
    %cst_12 = arith.constant dense<0.000000e+00> : vector<8xf32>
    %18 = vector.multi_reduction <add>, %17, %cst_12 [1] : vector<8x2xf32> to vector<8xf32>
    %19 = vector.shape_cast %18 : vector<8xf32> to vector<8x1xf32>
    %20 = tpu.reciprocal %19 {approx = true} : vector<8x1xf32> -> vector<8x1xf32>
    %21 = arith.mulf %19, %20 : vector<8x1xf32>
    %cst_13 = arith.constant 2.000000e+00 : f32
    %22 = vector.broadcast %cst_13 : f32 to vector<8x1xf32>
    %23 = arith.subf %22, %21 : vector<8x1xf32>
    %24 = arith.mulf %20, %23 : vector<8x1xf32>
    %25 = vector.broadcast %24 : vector<8x1xf32> to vector<8x2xf32>
    %26 = arith.mulf %17, %25 : vector<8x2xf32>
    %c0_14 = arith.constant 0 : index
    %c0_15 = arith.constant 0 : index
    %27 = vector.load %arg6[%c0_14, %c0_15] : memref<8x2xf32, #tpu.memory_space<vmem>>, vector<8x2xf32>
    tpu.vector_store %arg6[%c0_14, %c0_15], %26 {strides = array<i32>} : memref<8x2xf32, #tpu.memory_space<vmem>>, vector<8x2xf32>,
    return
  }
  func.func @transform_0(%arg0: i32) -> (i32, i32) {
    %c0_i32 = arith.constant 0 : i32
    %c0_i32_0 = arith.constant 0 : i32
    return %arg0, %c0_i32 : i32, i32
  }
  func.func @transform_1(%arg0: i32) -> (i32, i32) {
    %c0_i32 = arith.constant 0 : i32
    %c0_i32_0 = arith.constant 0 : i32
    %c0_i32_1 = arith.constant 0 : i32
    return %c0_i32, %c0_i32_0 : i32, i32
  }
  func.func @transform_2(%arg0: i32) -> (i32, i32) {
    %c0_i32 = arith.constant 0 : i32
    %c0_i32_0 = arith.constant 0 : i32
    %c0_i32_1 = arith.constant 0 : i32
    return %c0_i32, %c0_i32_0 : i32, i32
  }
  func.func @transform_3(%arg0: i32) -> (i32, i32) {
    %c0_i32 = arith.constant 0 : i32
    %c0_i32_0 = arith.constant 0 : i32
    %c0_i32_1 = arith.constant 0 : i32
    return %c0_i32, %c0_i32_0 : i32, i32
  }
  func.func @transform_4(%arg0: i32) -> (i32, i32) {
    %c0_i32 = arith.constant 0 : i32
    %c0_i32_0 = arith.constant 0 : i32
    %c0_i32_1 = arith.constant 0 : i32
    return %c0_i32, %c0_i32_0 : i32, i32
  }
  func.func @transform_5(%arg0: i32) -> (i32, i32) {
    %c0_i32 = arith.constant 0 : i32
    %c0_i32_0 = arith.constant 0 : i32
    return %arg0, %c0_i32 : i32, i32
  }
}

</mosaic_0001>

<llo_original>
// kernel: cinsiyet_net_forward.1
$region0: #{cinsiyet_net_forward.1}
  #allocation0 [shape = 'u32[]', space=smem, size = 0x4, offset = 0x4, fixed_abs, tag = 'smem constant byte address 0x4 - core index']
  #allocation1 [shape = 'u32[144,128]{1,0:T(1,128)}', space=vmem, size = 0x12000, scoped, tag = 'internal scratch']
  %s0 = inlined_call_operand.vmem [shape: f32[8,16], index: 0, kind: input, shape index: {}]
  %s1 = inlined_call_operand.vmem [shape: f32[16,32], index: 1, kind: input, shape index: {}]
  %s2 = inlined_call_operand.vmem [shape: f32[1,32], index: 2, kind: input, shape index: {}]
  %s3 = inlined_call_operand.vmem [shape: f32[32,2], index: 3, kind: input, shape index: {}]
  %s4 = inlined_call_operand.vmem [shape: f32[1,2], index: 4, kind: input, shape index: {}]
  %s5 = inlined_call_operand.vmem [shape: f32[8,2], index: 5, kind: output, shape index: {}]
  %s6 = sld [smem:[#allocation0]]
  $region30: #{cinsiyet_net_forward.1} parent=0
    _
  %s8 = ssub.s32 1, %s6
  %s9 = scalar_select 0, %s8, %s6
  // Predicated region
  $region2: #{cinsiyet_net_forward.1} parent=0 // pred_check
    _
  $region3: #{cinsiyet_net_forward.1} parent=0 // pred_check_branch
    %11 = sbr.rel (0) target = $region5
  $region4: #{cinsiyet_net_forward.1} parent=0 // pred_region
    _
  $region5: #{cinsiyet_net_forward.1} parent=0 // pred_fallthru
    _
  // Predicated region
  $region6: #{cinsiyet_net_forward.1} parent=0 // pred_check
    _
  $region7: #{cinsiyet_net_forward.1} parent=0 // pred_check_branch
    %13 = sbr.rel (0) target = $region9
  $region8: #{cinsiyet_net_forward.1} parent=0 // pred_region
    _
  $region9: #{cinsiyet_net_forward.1} parent=0 // pred_fallthru
    _
  // Predicated region
  $region10: #{cinsiyet_net_forward.1} parent=0 // pred_check
    _
  $region11: #{cinsiyet_net_forward.1} parent=0 // pred_check_branch
    %15 = sbr.rel (0) target = $region13
  $region12: #{cinsiyet_net_forward.1} parent=0 // pred_region
    _
  $region13: #{cinsiyet_net_forward.1} parent=0 // pred_fallthru
    _
  // Predicated region
  $region14: #{cinsiyet_net_forward.1} parent=0 // pred_check
    _
  $region15: #{cinsiyet_net_forward.1} parent=0 // pred_check_branch
    %17 = sbr.rel (0) target = $region17
  $region16: #{cinsiyet_net_forward.1} parent=0 // pred_region
    _
  $region17: #{cinsiyet_net_forward.1} parent=0 // pred_fallthru
    _
  // Predicated region
  $region18: #{cinsiyet_net_forward.1} parent=0 // pred_check
    _
  $region19: #{cinsiyet_net_forward.1} parent=0 // pred_check_branch
    %19 = sbr.rel (0) target = $region21
  $region20: #{cinsiyet_net_forward.1} parent=0 // pred_region
    _
  $region21: #{cinsiyet_net_forward.1} parent=0 // pred_fallthru
    _
  %v20 = vld [vmem:[%s0] sm:$0xff]
  %v21 = vld [vmem:[%s1] sm:$0xff]
  %v22 = vld [vmem:[%s1 + $0x8] sm:$0xff]
  %v23 = vld [vmem:[%s2] sm:$0x1]
  %v25 = vlaneseq
  %v26 = vshrl.u32 %v25, 7
  %v27 = vsub.s32 0, %v26
  %v28 = vrot.slane %v23, %v27
  %vm30 = vcmask 130048
  %v32 = vsel %vm30, %v20, 0
  %34 = vmatprep.subr.mxu0 0.0
  %35 = vmatpush1.msra.mxu0 %v21
  %36 = vmatprep.subr.mxu0 0.0
  %37 = vmatpush1.msra.mxu0 %v22
  %38 = vmatprep.subr.mxu0 0.0
  %39 = vmatpush1.msra.mxu0 0.0
  %40 = vmatprep.subr.mxu0 0.0
  %41 = vmatpush1.msra.mxu0 0.0
  %42 = vmatprep.subr.mxu0 0.0
  %43 = vmatpush1.msra.mxu0 0.0
  %44 = vmatprep.subr.mxu0 0.0
  %45 = vmatpush1.msra.mxu0 0.0
  %46 = vmatprep.subr.mxu0 0.0
  %47 = vmatpush1.msra.mxu0 0.0
  %48 = vmatprep.subr.mxu0 0.0
  %49 = vmatpush1.msra.mxu0 0.0
  %50 = vmatprep.subr.mxu0 0.0
  %51 = vmatpush1.msra.mxu0 0.0
  %52 = vmatprep.subr.mxu0 0.0
  %53 = vmatpush1.msra.mxu0 0.0
  %54 = vmatprep.subr.mxu0 0.0
  %55 = vmatpush1.msra.mxu0 0.0
  %56 = vmatprep.subr.mxu0 0.0
  %57 = vmatpush1.msra.mxu0 0.0
  %58 = vmatprep.subr.mxu0 0.0
  %59 = vmatpush1.msra.mxu0 0.0
  %60 = vmatprep.subr.mxu0 0.0
  %61 = vmatpush1.msra.mxu0 0.0
  %62 = vmatprep.subr.mxu0 0.0
  %63 = vmatpush1.msra.mxu0 0.0
  %64 = vmatprep.subr.mxu0 0.0
  %65 = vmatpush1.msra.mxu0 0.0
  %66 = vmatprep.subr.mxu0 0.0
  %67 = vmatpush1.msra.mxu0 0.0
  %68 = vmatprep.subr.mxu0 0.0
  %69 = vmatpush1.msra.mxu0 0.0
  %70 = vmatprep.subr.mxu0 0.0
  %71 = vmatpush1.msra.mxu0 0.0
  %72 = vmatprep.subr.mxu0 0.0
  %73 = vmatpush1.msra.mxu0 0.0
  %74 = vmatprep.subr.mxu0 0.0
  %75 = vmatpush1.msra.mxu0 0.0
  %76 = vmatprep.subr.mxu0 0.0
  %77 = vmatpush1.msra.mxu0 0.0
  %78 = vmatprep.subr.mxu0 0.0
  %79 = vmatpush1.msra.mxu0 0.0
  %80 = vmatprep.subr.mxu0 0.0
  %81 = vmatpush1.msra.mxu0 0.0
  %82 = vmatprep.subr.mxu0 0.0
  %83 = vmatpush1.msra.mxu0 0.0
  %84 = vmatprep.subr.mxu0 0.0
  %85 = vmatpush1.msra.mxu0 0.0
  %86 = vmatprep.subr.mxu0 0.0
  %87 = vmatpush1.msra.mxu0 0.0
  %88 = vmatprep.subr.mxu0 0.0
  %89 = vmatpush1.msra.mxu0 0.0
  %90 = vmatprep.subr.mxu0 0.0
  %91 = vmatpush1.msra.mxu0 0.0
  %92 = vmatprep.subr.mxu0 0.0
  %93 = vmatpush1.msra.mxu0 0.0
  %94 = vmatprep.subr.mxu0 0.0
  %95 = vmatpush1.msra.mxu0 0.0
  %96 = vmatprep.subr.mxu0 0.0
  %97 = vmatpush1.msra.mxu0 0.0
  %98 = vmatprep.mubr.f32.mxu0 0.0
  %99 = vmatmul.mubr.f32.gmra.mrb[0].mxu0 %v32
  %v100 = vpop.f32.mrb[0].mxu0
  %v101 = vadd.f32 %v28, %v100
  %v102 = vpop.f32.mrb[0].mxu0
  %103 = vdwg.mxu0
  %v104 = vmax.f32 %v101, 0.0
  %v105 = vld [vmem:[%s3] sm:$0xff]
  %v106 = vld [vmem:[%s3 + $0x8] sm:$0xff]
  %v107 = vld [vmem:[%s3 + $0x10] sm:$0xff]
  %v108 = vld [vmem:[%s3 + $0x18] sm:$0xff]
  %v109 = vld [vmem:[%s4] sm:$0x1]
  %v111 = vlaneseq
  %v112 = vshrl.u32 %v111, 7
  %v113 = vsub.s32 0, %v112
  %v114 = vrot.slane %v109, %v113
  %vm116 = vcmask 261120
  %v118 = vsel %vm116, %v104, 0
  %120 = vmatprep.subr.mxu0 0.0
  %121 = vmatpush1.msra.mxu0 %v105
  %122 = vmatprep.subr.mxu0 0.0
  %123 = vmatpush1.msra.mxu0 %v106
  %124 = vmatprep.subr.mxu0 0.0
  %125 = vmatpush1.msra.mxu0 %v107
  %126 = vmatprep.subr.mxu0 0.0
  %127 = vmatpush1.msra.mxu0 %v108
  %128 = vmatprep.subr.mxu0 0.0
  %129 = vmatpush1.msra.mxu0 0.0
  %130 = vmatprep.subr.mxu0 0.0
  %131 = vmatpush1.msra.mxu0 0.0
  %132 = vmatprep.subr.mxu0 0.0
  %133 = vmatpush1.msra.mxu0 0.0
  %134 = vmatprep.subr.mxu0 0.0
  %135 = vmatpush1.msra.mxu0 0.0
  %136 = vmatprep.subr.mxu0 0.0
  %137 = vmatpush1.msra.mxu0 0.0
  %138 = vmatprep.subr.mxu0 0.0
  %139 = vmatpush1.msra.mxu0 0.0
  %140 = vmatprep.subr.mxu0 0.0
  %141 = vmatpush1.msra.mxu0 0.0
  %142 = vmatprep.subr.mxu0 0.0
  %143 = vmatpush1.msra.mxu0 0.0
  %144 = vmatprep.subr.mxu0 0.0
  %145 = vmatpush1.msra.mxu0 0.0
  %146 = vmatprep.subr.mxu0 0.0
  %147 = vmatpush1.msra.mxu0 0.0
  %148 = vmatprep.subr.mxu0 0.0
  %149 = vmatpush1.msra.mxu0 0.0
  %150 = vmatprep.subr.mxu0 0.0
  %151 = vmatpush1.msra.mxu0 0.0
  %152 = vmatprep.subr.mxu0 0.0
  %153 = vmatpush1.msra.mxu0 0.0
  %154 = vmatprep.subr.mxu0 0.0
  %155 = vmatpush1.msra.mxu0 0.0
  %156 = vmatprep.subr.mxu0 0.0
  %157 = vmatpush1.msra.mxu0 0.0
  %158 = vmatprep.subr.mxu0 0.0
  %159 = vmatpush1.msra.mxu0 0.0
  %160 = vmatprep.subr.mxu0 0.0
  %161 = vmatpush1.msra.mxu0 0.0
  %162 = vmatprep.subr.mxu0 0.0
  %163 = vmatpush1.msra.mxu0 0.0
  %164 = vmatprep.subr.mxu0 0.0
  %165 = vmatpush1.msra.mxu0 0.0
  %166 = vmatprep.subr.mxu0 0.0
  %167 = vmatpush1.msra.mxu0 0.0
  %168 = vmatprep.subr.mxu0 0.0
  %169 = vmatpush1.msra.mxu0 0.0
  %170 = vmatprep.subr.mxu0 0.0
  %171 = vmatpush1.msra.mxu0 0.0
  %172 = vmatprep.subr.mxu0 0.0
  %173 = vmatpush1.msra.mxu0 0.0
  %174 = vmatprep.subr.mxu0 0.0
  %175 = vmatpush1.msra.mxu0 0.0
  %176 = vmatprep.subr.mxu0 0.0
  %177 = vmatpush1.msra.mxu0 0.0
  %178 = vmatprep.subr.mxu0 0.0
  %179 = vmatpush1.msra.mxu0 0.0
  %180 = vmatprep.subr.mxu0 0.0
  %181 = vmatpush1.msra.mxu0 0.0
  %182 = vmatprep.subr.mxu0 0.0
  %183 = vmatpush1.msra.mxu0 0.0
  %184 = vmatprep.mubr.f32.mxu0 0.0
  %185 = vmatmul.mubr.f32.gmra.mrb[0].mxu0 %v118
  %v186 = vpop.f32.mrb[0].mxu0
  %v187 = vadd.f32 %v114, %v186
  %v188 = vpop.f32.mrb[0].mxu0
  %189 = vdwg.mxu0
  %vm190 = vcmask 15360
  %v191 = vsel %vm190, %v187, -inf
  %192 = vmax.xlane.f32.xlu0 %v191
  %v193 = vpop.xlane.xlu0 %192
  %v194 = vsub.f32 %v187, %v193
  %v195 = vmul.f32 %v194, 1.442695
  %v196 = vpow.pop %v195
  %v197 = vsel %vm190, %v196, 0.0
  %198 = vadd.xlane.f32.xlu0 %v197
  %v199 = vpop.xlane.xlu0 %198
  %v200 = vrcp.pop %v199
  %v201 = vmul.f32 %v199, %v200
  %v202 = vsub.f32 2.0, %v201
  %v203 = vmul.f32 %v200, %v202
  %v204 = vmul.f32 %v196, %v203
  %205 = vst.msk [vmem:[%s5] sm:$0xff] %vm190, %v204
  // Predicated region
  $region22: #{cinsiyet_net_forward.1} parent=0 // pred_check
    _
  $region23: #{cinsiyet_net_forward.1} parent=0 // pred_check_branch
    %207 = sbr.rel (0) target = $region25
  $region24: #{cinsiyet_net_forward.1} parent=0 // pred_region
    _
  $region25: #{cinsiyet_net_forward.1} parent=0 // pred_fallthru
    _
  // Predicated region
  $region26: #{cinsiyet_net_forward.1} parent=0 // pred_check
    _
  $region27: #{cinsiyet_net_forward.1} parent=0 // pred_check_branch
    %209 = sbr.rel (0) target = $region29
  $region28: #{cinsiyet_net_forward.1} parent=0 // pred_region
    _
  $region29: #{cinsiyet_net_forward.1} parent=0 // pred_fallthru
    _

</llo_original>
